<compile_context>
chip_gen: v7x
topology: tpu7x:2x2x1
jax: 0.10.0
libtpu: 0.0.40
codegen_flags: <defaults>
</compile_context>

<pallas_src>
import jax
import jax.numpy as jnp
from jax.experimental import pallas as pl
from jax.experimental.pallas import tpu as pltpu


def _round_up(x, m):
    return ((x + m - 1) // m) * m


# ----------------------------------------------------------------------------
# Kernel 1: tiled reduction over S producing per-(b, c) class_weight and eq.
#   grid = (num_row_tiles [parallel], num_s_tiles [arbitrary])
#   inputs : pre2, gt2   [R_pad, S_pad]   blocks (row_tile, s_tile)
#   outputs: cw_col, eq_col [R_pad, 1]    blocks (row_tile, 1), f32
#   scratch: per-lane f32 accumulators (row_tile, 128) x 2
# ----------------------------------------------------------------------------
def _reduce_kernel(pre_ref, gt_ref, cw_ref, eq_ref, cw_acc, eq_acc):
    s_idx = pl.program_id(1)

    @pl.when(s_idx == 0)
    def _init():
        cw_acc[...] = jnp.zeros_like(cw_acc)
        eq_acc[...] = jnp.zeros_like(eq_acc)

    # Per-lane accumulation: one 128-lane slab at a time (lane-aligned static
    # slices -> pure VPU adds, no per-tile XLU reduce). Unrolled; s_tile/128
    # is a small static count.
    n_chunks = pre_ref.shape[-1] // 128
    cw_p = cw_acc[...]
    eq_p = eq_acc[...]
    for k in range(n_chunks):
        lo = k * 128
        p = pre_ref[:, lo:lo + 128].astype(jnp.float32)
        g = gt_ref[:, lo:lo + 128].astype(jnp.float32)
        cw_p = cw_p + g
        # torch: pre.eq(gt) * gt  ==  gt where equal else 0
        eq_p = eq_p + jnp.where(p == g, g, 0.0)
    cw_acc[...] = cw_p
    eq_acc[...] = eq_p

    # Single cross-lane reduce, only on the last S tile.
    @pl.when(s_idx == pl.num_programs(1) - 1)
    def _finalize():
        cw_ref[...] = jnp.sum(cw_acc[...], axis=-1, keepdims=True)
        eq_ref[...] = jnp.sum(eq_acc[...], axis=-1, keepdims=True)


# ----------------------------------------------------------------------------
# Kernel 2: tiny epilogue on the [B, C] reductions -> scalar weighted_acc.
# ----------------------------------------------------------------------------
def _finalize_kernel(cw_ref, eq_ref, acc_ref):
    cw = cw_ref[...]                                        # [B, C] f32
    eq = eq_ref[...]                                        # [B, C] f32
    wsum = jnp.sum(cw, axis=-1, keepdims=True)              # [B, 1]
    # exact reciprocal (approx=False) to stay within reference tolerance;
    # unguarded like the torch module (wsum == 0 -> inf/nan).
    inv_w2 = pl.reciprocal(wsum * wsum, approx=False)       # [B, 1]
    per_batch = jnp.sum(eq * (wsum - cw) * inv_w2,
                        axis=-1, keepdims=True)             # [B, 1]
    acc_ref[...] = (jnp.sum(per_batch, axis=0, keepdims=True)
                    / per_batch.shape[0])                   # [1, 1]


def classify_acc(pre, gt, class_amount, *, row_tile=64, s_tile=8192):
    """Returns (weighted_acc scalar f32, class_weight [B, C] in gt.dtype)."""
    assert pre.shape == gt.shape
    shape = pre.shape
    b, c = int(shape[0]), int(shape[1])
    assert c == class_amount
    s = 1
    for d in shape[2:]:
        s *= int(d)
    bc = b * c

    pre2 = pre.reshape(bc, s)
    gt2 = gt.reshape(bc, s)

    # ---- tile-size selection: multiples of (8, 128), VMEM-friendly on all
    # generations (2 inputs x 2 pipeline buffers x 64 x 8192 x 4B = 8 MiB).
    r_gran, l_gran = 8, 128
    row_tile = _round_up(max(r_gran, min(row_tile, _round_up(bc, r_gran))), r_gran)
    s_tile = _round_up(max(l_gran, min(s_tile, _round_up(s, l_gran))), l_gran)

    r_pad = _round_up(bc, row_tile)
    s_pad = _round_up(s, s_tile)
    if (r_pad, s_pad) != (bc, s):
        # zero padding is neutral: gt==0 contributes nothing to cw;
        # (0 == 0) * 0 == 0 contributes nothing to eq.
        pre2 = jnp.pad(pre2, ((0, r_pad - bc), (0, s_pad - s)))
        gt2 = jnp.pad(gt2, ((0, r_pad - bc), (0, s_pad - s)))

    grid = (r_pad // row_tile, s_pad // s_tile)
    itemsize = jnp.dtype(gt.dtype).itemsize

    cw_col, eq_col = pl.pallas_call(
        _reduce_kernel,
        grid=grid,
        in_specs=[
            pl.BlockSpec((row_tile, s_tile), lambda r, si: (r, si)),
            pl.BlockSpec((row_tile, s_tile), lambda r, si: (r, si)),
        ],
        out_specs=(
            pl.BlockSpec((row_tile, 1), lambda r, si: (r, 0)),
            pl.BlockSpec((row_tile, 1), lambda r, si: (r, 0)),
        ),
        out_shape=(
            jax.ShapeDtypeStruct((r_pad, 1), jnp.float32),
            jax.ShapeDtypeStruct((r_pad, 1), jnp.float32),
        ),
        scratch_shapes=[
            pltpu.VMEM((row_tile, 128), jnp.float32),
            pltpu.VMEM((row_tile, 128), jnp.float32),
        ],
        compiler_params=pltpu.CompilerParams(
            dimension_semantics=("parallel", "arbitrary")),
        cost_estimate=pl.CostEstimate(
            flops=4 * r_pad * s_pad,
            transcendentals=0,
            bytes_accessed=2 * r_pad * s_pad * itemsize + 2 * r_pad * 4),
    )(pre2, gt2)

    # Drop padded rows; reshape back to [B, C] for the tiny epilogue.
    cw = cw_col[:bc, 0].reshape(b, c)
    eq = eq_col[:bc, 0].reshape(b, c)

    acc = pl.pallas_call(
        _finalize_kernel,
        grid=(1,),
        in_specs=[
            pl.BlockSpec((b, c), lambda i: (0, 0)),
            pl.BlockSpec((b, c), lambda i: (0, 0)),
        ],
        out_specs=pl.BlockSpec((1, 1), lambda i: (0, 0)),
        out_shape=jax.ShapeDtypeStruct((1, 1), jnp.float32),
    )(cw, eq)

    return acc.reshape(()), cw.astype(gt.dtype)


def _reference(pre, gt):
    b, c = pre.shape[0], pre.shape[1]
    pre = pre.reshape(b, c, -1)
    gt = gt.reshape(b, c, -1)
    cw = jnp.sum(gt, -1)
    wsum = jnp.sum(cw, -1, keepdims=True)
    eq = jnp.sum((pre == gt).astype(gt.dtype) * gt, -1)
    wacc = jnp.mean(jnp.sum(eq * (wsum - cw) / wsum ** 2, -1), 0)
    return wacc, cw


if __name__ == "__main__":
    key = jax.random.PRNGKey(0)
    B, C, H, W = 2, 4, 16, 16
    k1, k2 = jax.random.split(key)

    gt_labels = jax.random.randint(k1, (B, H, W), 0, C)
    pre_labels = jax.random.randint(k2, (B, H, W), 0, C)
    gt = jax.nn.one_hot(gt_labels, C, axis=1).astype(jnp.float32)    # [B, C, H, W]
    pre = jax.nn.one_hot(pre_labels, C, axis=1).astype(jnp.float32)  # [B, C, H, W]

    weighted_acc, class_weight = classify_acc(pre, gt, C)
    jax.block_until_ready((weighted_acc, class_weight))

    ref_acc, ref_cw = _reference(pre, gt)
    assert jnp.allclose(weighted_acc, ref_acc, rtol=1e-5, atol=1e-6)
    assert jnp.allclose(class_weight, ref_cw, rtol=1e-5, atol=1e-6)

    print("KERNEL_OK")
</pallas_src>

<mosaic_0001>
module attributes {stable_mosaic.version = 11 : i64} {
  func.func @_reduce_kernel(%arg0: i32, %arg1: i32, %arg2: memref<8x256xf32, #tpu.memory_space<vmem>>, %arg3: memref<8x256xf32, #tpu.memory_space<vmem>>, %arg4: memref<8x1xf32, #tpu.memory_space<vmem>>, %arg5: memref<8x1xf32, #tpu.memory_space<vmem>>, %arg6: memref<8x128xf32, #tpu.memory_space<vmem>>, %arg7: memref<8x128xf32, #tpu.memory_space<vmem>>) attributes {dimension_semantics = [#tpu.dimension_semantics<parallel>, #tpu.dimension_semantics<arbitrary>], iteration_bounds = array<i64: 1, 1>, scalar_prefetch = 0 : i64, scratch_operands = 2 : i64, tpu.core_type = #tpu.core_type<tc>, window_params = [{transform_indices = @transform_0, window_bounds = array<i64: 8, 256>}, {transform_indices = @transform_1, window_bounds = array<i64: 8, 256>}, {transform_indices = @transform_2, window_bounds = array<i64: 8, 1>}, {transform_indices = @transform_3, window_bounds = array<i64: 8, 1>}]} {
    %c0_i32 = arith.constant 0 : i32
    %0 = arith.cmpi eq, %arg1, %c0_i32 : i32
    %1 = arith.extui %0 : i1 to i32
    %c0_i32_0 = arith.constant 0 : i32
    %2 = arith.cmpi ne, %1, %c0_i32_0 : i32
    scf.if %2 {
      %cst_18 = arith.constant 0.000000e+00 : f32
      %24 = vector.broadcast %cst_18 : f32 to vector<8x128xf32>
      %c0_19 = arith.constant 0 : index
      %c0_20 = arith.constant 0 : index
      %25 = vector.load %arg6[%c0_19, %c0_20] : memref<8x128xf32, #tpu.memory_space<vmem>>, vector<8x128xf32>
      tpu.vector_store %arg6[%c0_19, %c0_20], %24 {strides = array<i32>} : memref<8x128xf32, #tpu.memory_space<vmem>>, vector<8x128xf32>,
      %cst_21 = arith.constant 0.000000e+00 : f32
      %26 = vector.broadcast %cst_21 : f32 to vector<8x128xf32>
      %c0_22 = arith.constant 0 : index
      %c0_23 = arith.constant 0 : index
      %27 = vector.load %arg7[%c0_22, %c0_23] : memref<8x128xf32, #tpu.memory_space<vmem>>, vector<8x128xf32>
      tpu.vector_store %arg7[%c0_22, %c0_23], %26 {strides = array<i32>} : memref<8x128xf32, #tpu.memory_space<vmem>>, vector<8x128xf32>,
    } else {
    }
    %c0 = arith.constant 0 : index
    %c0_1 = arith.constant 0 : index
    %3 = vector.load %arg6[%c0, %c0_1] : memref<8x128xf32, #tpu.memory_space<vmem>>, vector<8x128xf32>
    %c0_2 = arith.constant 0 : index
    %c0_3 = arith.constant 0 : index
    %4 = vector.load %arg7[%c0_2, %c0_3] : memref<8x128xf32, #tpu.memory_space<vmem>>, vector<8x128xf32>
    %c0_4 = arith.constant 0 : index
    %c0_5 = arith.constant 0 : index
    %5 = vector.load %arg2[%c0_4, %c0_5] : memref<8x256xf32, #tpu.memory_space<vmem>>, vector<8x128xf32>
    %c0_6 = arith.constant 0 : index
    %c0_7 = arith.constant 0 : index
    %6 = vector.load %arg3[%c0_6, %c0_7] : memref<8x256xf32, #tpu.memory_space<vmem>>, vector<8x128xf32>
    %7 = arith.addf %3, %6 : vector<8x128xf32>
    %8 = arith.cmpf oeq, %5, %6 : vector<8x128xf32>
    %cst = arith.constant 0.000000e+00 : f32
    %9 = vector.broadcast %cst : f32 to vector<8x128xf32>
    %10 = arith.select %8, %6, %9 : vector<8x128xi1>, vector<8x128xf32>
    %11 = arith.addf %4, %10 : vector<8x128xf32>
    %c0_8 = arith.constant 0 : index
    %c128 = arith.constant 128 : index
    %12 = vector.load %arg2[%c0_8, %c128] : memref<8x256xf32, #tpu.memory_space<vmem>>, vector<8x128xf32>
    %c0_9 = arith.constant 0 : index
    %c128_10 = arith.constant 128 : index
    %13 = vector.load %arg3[%c0_9, %c128_10] : memref<8x256xf32, #tpu.memory_space<vmem>>, vector<8x128xf32>
    %14 = arith.addf %7, %13 : vector<8x128xf32>
    %15 = arith.cmpf oeq, %12, %13 : vector<8x128xf32>
    %cst_11 = arith.constant 0.000000e+00 : f32
    %16 = vector.broadcast %cst_11 : f32 to vector<8x128xf32>
    %17 = arith.select %15, %13, %16 : vector<8x128xi1>, vector<8x128xf32>
    %18 = arith.addf %11, %17 : vector<8x128xf32>
    %c0_12 = arith.constant 0 : index
    %c0_13 = arith.constant 0 : index
    %19 = vector.load %arg6[%c0_12, %c0_13] : memref<8x128xf32, #tpu.memory_space<vmem>>, vector<8x128xf32>
    tpu.vector_store %arg6[%c0_12, %c0_13], %14 {strides = array<i32>} : memref<8x128xf32, #tpu.memory_space<vmem>>, vector<8x128xf32>,
    %c0_14 = arith.constant 0 : index
    %c0_15 = arith.constant 0 : index
    %20 = vector.load %arg7[%c0_14, %c0_15] : memref<8x128xf32, #tpu.memory_space<vmem>>, vector<8x128xf32>
    tpu.vector_store %arg7[%c0_14, %c0_15], %18 {strides = array<i32>} : memref<8x128xf32, #tpu.memory_space<vmem>>, vector<8x128xf32>,
    %c0_i32_16 = arith.constant 0 : i32
    %21 = arith.cmpi eq, %arg1, %c0_i32_16 : i32
    %22 = arith.extui %21 : i1 to i32
    %c0_i32_17 = arith.constant 0 : i32
    %23 = arith.cmpi ne, %22, %c0_i32_17 : i32
    scf.if %23 {
      %c0_18 = arith.constant 0 : index
      %c0_19 = arith.constant 0 : index
      %24 = vector.load %arg6[%c0_18, %c0_19] : memref<8x128xf32, #tpu.memory_space<vmem>>, vector<8x128xf32>
      %cst_20 = arith.constant dense<0.000000e+00> : vector<8xf32>
      %25 = vector.multi_reduction <add>, %24, %cst_20 [1] : vector<8x128xf32> to vector<8xf32>
      %26 = vector.shape_cast %25 : vector<8xf32> to vector<8x1xf32>
      %c0_21 = arith.constant 0 : index
      %c0_22 = arith.constant 0 : index
      %27 = vector.load %arg4[%c0_21, %c0_22] : memref<8x1xf32, #tpu.memory_space<vmem>>, vector<8x1xf32>
      tpu.vector_store %arg4[%c0_21, %c0_22], %26 {strides = array<i32>} : memref<8x1xf32, #tpu.memory_space<vmem>>, vector<8x1xf32>,
      %c0_23 = arith.constant 0 : index
      %c0_24 = arith.constant 0 : index
      %28 = vector.load %arg7[%c0_23, %c0_24] : memref<8x128xf32, #tpu.memory_space<vmem>>, vector<8x128xf32>
      %cst_25 = arith.constant dense<0.000000e+00> : vector<8xf32>
      %29 = vector.multi_reduction <add>, %28, %cst_25 [1] : vector<8x128xf32> to vector<8xf32>
      %30 = vector.shape_cast %29 : vector<8xf32> to vector<8x1xf32>
      %c0_26 = arith.constant 0 : index
      %c0_27 = arith.constant 0 : index
      %31 = vector.load %arg5[%c0_26, %c0_27] : memref<8x1xf32, #tpu.memory_space<vmem>>, vector<8x1xf32>
      tpu.vector_store %arg5[%c0_26, %c0_27], %30 {strides = array<i32>} : memref<8x1xf32, #tpu.memory_space<vmem>>, vector<8x1xf32>,
    } else {
    }
    return
  }
  func.func @transform_0(%arg0: i32, %arg1: i32) -> (i32, i32) {
    %c0_i32 = arith.constant 0 : i32
    return %arg0, %arg1 : i32, i32
  }
  func.func @transform_1(%arg0: i32, %arg1: i32) -> (i32, i32) {
    %c0_i32 = arith.constant 0 : i32
    return %arg0, %arg1 : i32, i32
  }
  func.func @transform_2(%arg0: i32, %arg1: i32) -> (i32, i32) {
    %c0_i32 = arith.constant 0 : i32
    %c0_i32_0 = arith.constant 0 : i32
    return %arg0, %c0_i32 : i32, i32
  }
  func.func @transform_3(%arg0: i32, %arg1: i32) -> (i32, i32) {
    %c0_i32 = arith.constant 0 : i32
    %c0_i32_0 = arith.constant 0 : i32
    return %arg0, %c0_i32 : i32, i32
  }
}

</mosaic_0001>

<llo_original>
// kernel: tpu_custom_call.1
$region0: #{tpu_custom_call.1}
  #allocation0 [shape = 'u32[]', space=smem, size = 0x4, offset = 0x4, fixed_abs, tag = 'smem constant byte address 0x4 - core index']
  #allocation1 [shape = 'u32[144,128]{1,0:T(1,128)}', space=vmem, size = 0x12000, scoped, tag = 'internal scratch']
  #allocation2 [shape = 'f32[8,128]{1,0:T(8,128)}', space=vmem, size = 0x1000, scoped, tag = 'scratch operand']
  #allocation3 [shape = 'f32[8,128]{1,0:T(8,128)}', space=vmem, size = 0x1000, scoped, tag = 'scratch operand']
  %s0 = inlined_call_operand.hbm [shape: f32[8,256], index: 0, kind: input, shape index: {}]
  %s1 = inlined_call_operand.hbm [shape: f32[8,256], index: 1, kind: input, shape index: {}]
  %s2 = inlined_call_operand.vmem [shape: f32[8,1], index: 2, kind: output, shape index: {0}]
  %s3 = inlined_call_operand.vmem [shape: f32[8,1], index: 3, kind: output, shape index: {1}]
  %4 = xla_tuple %s2, %s3
  %s5 = sld [smem:[#allocation0]]
  $region42: #{tpu_custom_call.1} parent=0
    _
  %s7 = ssub.s32 1, %s5
  %s8 = scalar_select 0, %s7, %s5
  $region1: #{tpu_custom_call.1} parent=0
    #allocation4 [shape = 'u8[8192]{0}', space=vmem, size = 0x2000, scoped, tag = 'input window, operand 0, single buffered']
    #allocation5 [shape = 's32[1]{0}', space=sflag, size = 0x4, scoped, tag = 'scoped memory for tpu_custom_call.1']
    #allocation6 [shape = 'u8[8192]{0}', space=vmem, size = 0x2000, scoped, tag = 'input window, operand 1, single buffered']
    #allocation7 [shape = 's32[1]{0}', space=sflag, size = 0x4, scoped, tag = 'scoped memory for tpu_custom_call.1']
    %9 = vsyncpa [#allocation5], 0
    %10 = vsyncpa [#allocation7], 0
    // Predicated region
    $region2: #{tpu_custom_call.1} parent=1 // pred_check
      _
    $region3: #{tpu_custom_call.1} parent=1 // pred_check_branch
      %12 = sbr.rel (0) target = $region5
    $region4: #{tpu_custom_call.1} parent=1 // pred_region
      %s14 = ssub.s32 256, 256
      %15 = vsyncadd [#allocation5], %s14
      %s17 = sshll.u32 [#allocation4], 4
      %s18 = int_to_ptr.vmem [resolvable:$true] %s17
      %20 = dma.hbm_to_vmem [thread:$0]  %s0, 256, %s18, [#allocation5]
    $region5: #{tpu_custom_call.1} parent=1 // pred_fallthru
      _
    // Predicated region
    $region6: #{tpu_custom_call.1} parent=1 // pred_check
      _
    $region7: #{tpu_custom_call.1} parent=1 // pred_check_branch
      %22 = sbr.rel (0) target = $region9
    $region8: #{tpu_custom_call.1} parent=1 // pred_region
      %s24 = ssub.s32 256, 256
      %25 = vsyncadd [#allocation7], %s24
      %s27 = sshll.u32 [#allocation6], 4
      %s28 = int_to_ptr.vmem [resolvable:$true] %s27
      %30 = dma.hbm_to_vmem [thread:$0]  %s1, 256, %s28, [#allocation7]
    $region9: #{tpu_custom_call.1} parent=1 // pred_fallthru
      _
    // Predicated region
    $region10: #{tpu_custom_call.1} parent=1 // pred_check
      _
    $region11: #{tpu_custom_call.1} parent=1 // pred_check_branch
      %32 = sbr.rel (0) target = $region13
    $region12: #{tpu_custom_call.1} parent=1 // pred_region
      %33 = dma.done [#allocation5], 256
    $region13: #{tpu_custom_call.1} parent=1 // pred_fallthru
      _
    // Predicated region
    $region14: #{tpu_custom_call.1} parent=1 // pred_check
      _
    $region15: #{tpu_custom_call.1} parent=1 // pred_check_branch
      %35 = sbr.rel (0) target = $region17
    $region16: #{tpu_custom_call.1} parent=1 // pred_region
      %36 = dma.done [#allocation7], 256
    $region17: #{tpu_custom_call.1} parent=1 // pred_fallthru
      _
    %p37 = scmp.eq.s32.totalorder 0, 0
    // Predicated region
    $region18: #{tpu_custom_call.1} parent=1 // pred_check
      %p38 = pneg %p37
    $region19: #{tpu_custom_call.1} parent=1 // pred_check_branch
      %40 = sbr.rel (%p38) target = $region21
    $region20: #{tpu_custom_call.1} parent=1 // pred_region
      %41 = vst [vmem:[#allocation2] sm:$0xff] 0.0
      %42 = vst [vmem:[#allocation3] sm:$0xff] 0.0
    $region21: #{tpu_custom_call.1} parent=1 // pred_fallthru
      _
    %v43 = vld [vmem:[#allocation2] sm:$0xff]
    %v44 = vld [vmem:[#allocation3] sm:$0xff]
    %v45 = vld [vmem:[#allocation4] sm:$0xff]
    %v46 = vld [vmem:[#allocation6] sm:$0xff]
    %v47 = vadd.f32 %v43, %v46
    %vm48 = vcmp.eq.f32.partialorder %v45, %v46
    %v49 = vsel %vm48, %v46, 0.0
    %v50 = vadd.f32 %v44, %v49
    %v51 = vld [vmem:[#allocation4 + $0x8] sm:$0xff]
    %v52 = vld [vmem:[#allocation6 + $0x8] sm:$0xff]
    %v53 = vadd.f32 %v47, %v52
    %vm54 = vcmp.eq.f32.partialorder %v51, %v52
    %v55 = vsel %vm54, %v52, 0.0
    %v56 = vadd.f32 %v50, %v55
    %57 = vst [vmem:[#allocation2] sm:$0xff] %v53
    %58 = vst [vmem:[#allocation3] sm:$0xff] %v56
    // Predicated region
    $region22: #{tpu_custom_call.1} parent=1 // pred_check
      %p59 = pneg %p37
    $region23: #{tpu_custom_call.1} parent=1 // pred_check_branch
      %61 = sbr.rel (%p59) target = $region25
    $region24: #{tpu_custom_call.1} parent=1 // pred_region
      %v62 = vld [vmem:[#allocation2] sm:$0xff]
      %63 = vadd.xlane.f32.xlu0 %v62
      %v64 = vpop.xlane.xlu0 %63
      %vm65 = vcmask 7168
      %66 = vst.msk [vmem:[%s2] sm:$0xff] %vm65, %v64
      %v67 = vld [vmem:[#allocation3] sm:$0xff]
      %68 = vadd.xlane.f32.xlu0 %v67
      %v69 = vpop.xlane.xlu0 %68
      %70 = vst.msk [vmem:[%s3] sm:$0xff] %vm65, %v69
    $region25: #{tpu_custom_call.1} parent=1 // pred_fallthru
      _
    // Predicated region
    $region26: #{tpu_custom_call.1} parent=1 // pred_check
      _
    $region27: #{tpu_custom_call.1} parent=1 // pred_check_branch
      %72 = sbr.rel (0) target = $region29
    $region28: #{tpu_custom_call.1} parent=1 // pred_region
      _
    $region29: #{tpu_custom_call.1} parent=1 // pred_fallthru
      _
    // Predicated region
    $region30: #{tpu_custom_call.1} parent=1 // pred_check
      _
    $region31: #{tpu_custom_call.1} parent=1 // pred_check_branch
      %74 = sbr.rel (0) target = $region33
    $region32: #{tpu_custom_call.1} parent=1 // pred_region
      _
    $region33: #{tpu_custom_call.1} parent=1 // pred_fallthru
      _
    // Predicated region
    $region34: #{tpu_custom_call.1} parent=1 // pred_check
      _
    $region35: #{tpu_custom_call.1} parent=1 // pred_check_branch
      %76 = sbr.rel (0) target = $region37
    $region36: #{tpu_custom_call.1} parent=1 // pred_region
      _
    $region37: #{tpu_custom_call.1} parent=1 // pred_fallthru
      _
    // Predicated region
    $region38: #{tpu_custom_call.1} parent=1 // pred_check
      _
    $region39: #{tpu_custom_call.1} parent=1 // pred_check_branch
      %78 = sbr.rel (0) target = $region41
    $region40: #{tpu_custom_call.1} parent=1 // pred_region
      _
    $region41: #{tpu_custom_call.1} parent=1 // pred_fallthru
      _
    %79 = vsyncpa [#allocation5], 1
    %80 = vsyncpa [#allocation7], 1

</llo_original>
